<compile_context>
chip_gen: v7x
topology: tpu7x:2x2x1
jax: 0.10.0
libtpu: 0.0.40
codegen_flags: <defaults>
</compile_context>

<pallas_src>
import jax
import jax.numpy as jnp
from jax.experimental import pallas as pl
from jax.experimental.pallas import tpu as pltpu

_LANES = 1024                      # lane-dense slab width (multiple of 128)
_DEFAULT_MIN_PALLAS_N = 256 * 1024  # below ~1 MiB of data, fused XLA wins


def _round_up(x, m):
    return ((x + m - 1) // m) * m


def _tpu_block_config():
    """Return (max_block_rows, vmem_limit_bytes) tuned per TPU generation."""
    try:
        vmem_bytes = pltpu.get_tpu_info().vmem_capacity_bytes
    except Exception:
        vmem_bytes = 64 * 1024 * 1024  # conservative (v7x-sized) default
    if vmem_bytes >= 96 * 1024 * 1024:
        # v5e / v6e: 128 MiB VMEM -> 8 MiB blocks, 32 MiB of double buffers.
        return 2048, 64 * 1024 * 1024
    # v7x: 64 MiB VMEM per TC -> 4 MiB blocks, 16 MiB of double buffers.
    return 1024, 40 * 1024 * 1024


def _affine_kernel(w_ref, b_ref, x_ref, o_ref):
    # w_ref, b_ref: (1, 1) f32 scalars in SMEM
    # x_ref, o_ref: (block_rows, _LANES) lane-dense tiles in VMEM
    w = w_ref[0, 0]
    b = b_ref[0, 0]
    o_ref[...] = (x_ref[...] * w + b).astype(o_ref.dtype)


def _pallas_affine_2d(slab, weight, bias, max_block_rows=None):
    rows, lanes = slab.shape
    assert lanes % 128 == 0

    auto_cap, vmem_limit = _tpu_block_config()
    if max_block_rows is not None:
        cap = max_block_rows
    else:
        cap = auto_cap
        if rows > 8:
            # Prefer >= 2 grid steps so v7x's two TensorCores both get work
            # (harmless ~0.35 us extra step on single-TC v5e/v6e).
            cap = min(cap, _round_up(pl.cdiv(rows, 2), 8))

    block_rows = min(cap, rows)
    # Edge-block rule: block dims must be multiples of (8,128) or equal to the
    # full array dims.
    assert block_rows == rows or block_rows % 8 == 0
    grid = (pl.cdiv(rows, block_rows),)   # partial edge block is masked

    w_smem = weight.reshape(1, 1).astype(jnp.float32)
    b_smem = bias.reshape(1, 1).astype(jnp.float32)

    itemsize = jnp.dtype(slab.dtype).itemsize
    return pl.pallas_call(
        _affine_kernel,
        out_shape=jax.ShapeDtypeStruct((rows, lanes), slab.dtype),
        grid_spec=pltpu.PrefetchScalarGridSpec(
            num_scalar_prefetch=0,
            grid=grid,
            in_specs=[
                pl.BlockSpec(memory_space=pltpu.SMEM),              # weight scalar
                pl.BlockSpec(memory_space=pltpu.SMEM),              # bias scalar
                pl.BlockSpec((block_rows, lanes), lambda i: (i, 0)),
            ],
            out_specs=pl.BlockSpec((block_rows, lanes), lambda i: (i, 0)),
        ),
        compiler_params=pltpu.CompilerParams(
            dimension_semantics=("parallel",),   # megacore / 2-TC sharding on v7x
            vmem_limit_bytes=vmem_limit,
        ),
        cost_estimate=pl.CostEstimate(
            flops=2 * rows * lanes,                  # one mul + one add / element
            transcendentals=0,
            bytes_accessed=2 * rows * lanes * itemsize,
        ),
    )(w_smem, b_smem, slab)


def linear_forward(x, weight, bias, *, min_pallas_n=_DEFAULT_MIN_PALLAS_N,
                   max_block_rows=None):
    """y = x @ weight.T + bias, with weight (1,1), bias (1,), x (N,1)."""
    n, f = x.shape
    assert f == 1 and weight.shape == (1, 1) and bias.shape == (1,)

    # Fused-XLA fallback: empty / tiny batches (launch overhead dominates) and
    # lane-ragged N (a Pallas path would need a full padded copy of x plus an
    # output slice = ~2x the minimum HBM traffic).  XLA emits a single fused
    # elementwise pass at HBM roofline here.
    if n == 0 or n < min_pallas_n or (n % _LANES) != 0:
        w = weight.astype(jnp.float32)[0, 0]
        b = bias.astype(jnp.float32)[0]
        return (x * w + b).astype(x.dtype)

    # Zero-copy lane-dense repack: (N, 1) -> (rows, _LANES).
    rows = n // _LANES
    slab = x.reshape(rows, _LANES)
    out_slab = _pallas_affine_2d(slab, weight, bias, max_block_rows)
    # Zero-copy unpack back to (N, 1).
    return out_slab.reshape(n, 1)


if __name__ == "__main__":
    key = jax.random.PRNGKey(0)
    kx, kw, kb = jax.random.split(key, 3)

    # deterministic parameters (PyTorch would use U(-1, 1) for fan_in=1)
    weight = jax.random.uniform(kw, (1, 1), minval=-1.0, maxval=1.0,
                                dtype=jnp.float32)
    bias = jax.random.uniform(kb, (1,), minval=-1.0, maxval=1.0,
                              dtype=jnp.float32)

    # (n, max_block_rows) cases:
    #   n=8      -> lane-ragged -> fused-XLA fallback path
    #   n=1000   -> lane-ragged -> fallback path
    #   n=4096   -> rows=4, single Pallas block (block == full array dims)
    #   n=13312  -> rows=13, block_rows=8 -> grid=(2,), masked partial edge block
    #   n=40960  -> rows=40, block_rows=16 -> grid=(3,), multi-step streaming
    cases = [(8, None), (1000, None), (4096, None), (13312, 8), (40960, 16)]
    for n, mbr in cases:
        x = jax.random.normal(jax.random.fold_in(kx, n), (n, 1), dtype=jnp.float32)
        y = linear_forward(x, weight, bias, min_pallas_n=0, max_block_rows=mbr)
        y = jax.block_until_ready(y)

        y_ref = x @ weight.T + bias
        assert y.shape == (n, 1)
        assert jnp.allclose(y, y_ref, atol=1e-6), f"mismatch vs reference (n={n})"

    print("KERNEL_OK")
</pallas_src>

<mosaic_0001>
module attributes {stable_mosaic.version = 11 : i64} {
  func.func @_affine_kernel(%arg0: i32, %arg1: memref<1x1xf32, #tpu.memory_space<smem>>, %arg2: memref<1x1xf32, #tpu.memory_space<smem>>, %arg3: memref<4x1024xf32, #tpu.memory_space<vmem>>, %arg4: memref<4x1024xf32, #tpu.memory_space<vmem>>) attributes {dimension_semantics = [#tpu.dimension_semantics<parallel>], iteration_bounds = array<i64: 1>, scalar_prefetch = 0 : i64, scratch_operands = 0 : i64, tpu.core_type = #tpu.core_type<tc>, window_params = [{transform_indices = @transform_0, window_bounds = array<i64: 1, 1>}, {transform_indices = @transform_1, window_bounds = array<i64: 1, 1>}, {transform_indices = @transform_2, window_bounds = array<i64: 4, 1024>}, {transform_indices = @transform_3, window_bounds = array<i64: 4, 1024>}]} {
    %c0 = arith.constant 0 : index
    %c0_0 = arith.constant 0 : index
    %0 = memref.load %arg1[%c0, %c0_0] : memref<1x1xf32, #tpu.memory_space<smem>>
    %c0_1 = arith.constant 0 : index
    %c0_2 = arith.constant 0 : index
    %1 = memref.load %arg2[%c0_1, %c0_2] : memref<1x1xf32, #tpu.memory_space<smem>>
    %c0_3 = arith.constant 0 : index
    %c0_4 = arith.constant 0 : index
    %2 = vector.load %arg3[%c0_3, %c0_4] : memref<4x1024xf32, #tpu.memory_space<vmem>>, vector<4x1024xf32>
    %3 = vector.broadcast %0 : f32 to vector<4x1024xf32>
    %4 = arith.mulf %2, %3 : vector<4x1024xf32>
    %5 = vector.broadcast %1 : f32 to vector<4x1024xf32>
    %6 = arith.addf %4, %5 : vector<4x1024xf32>
    %c0_5 = arith.constant 0 : index
    %c0_6 = arith.constant 0 : index
    %7 = vector.load %arg4[%c0_5, %c0_6] : memref<4x1024xf32, #tpu.memory_space<vmem>>, vector<4x1024xf32>
    tpu.vector_store %arg4[%c0_5, %c0_6], %6 {strides = array<i32>} : memref<4x1024xf32, #tpu.memory_space<vmem>>, vector<4x1024xf32>,
    return
  }
  func.func @transform_0(%arg0: i32) -> (i32, i32) {
    %c0_i32 = arith.constant 0 : i32
    %c0_i32_0 = arith.constant 0 : i32
    %c0_i32_1 = arith.constant 0 : i32
    return %c0_i32, %c0_i32_0 : i32, i32
  }
  func.func @transform_1(%arg0: i32) -> (i32, i32) {
    %c0_i32 = arith.constant 0 : i32
    %c0_i32_0 = arith.constant 0 : i32
    %c0_i32_1 = arith.constant 0 : i32
    return %c0_i32, %c0_i32_0 : i32, i32
  }
  func.func @transform_2(%arg0: i32) -> (i32, i32) {
    %c0_i32 = arith.constant 0 : i32
    %c0_i32_0 = arith.constant 0 : i32
    return %arg0, %c0_i32 : i32, i32
  }
  func.func @transform_3(%arg0: i32) -> (i32, i32) {
    %c0_i32 = arith.constant 0 : i32
    %c0_i32_0 = arith.constant 0 : i32
    return %arg0, %c0_i32 : i32, i32
  }
}

</mosaic_0001>

<llo_original>
// kernel: tpu_custom_call.1
$region0: #{tpu_custom_call.1}
  #allocation0 [shape = 'u32[]', space=smem, size = 0x4, offset = 0x4, fixed_abs, tag = 'smem constant byte address 0x4 - core index']
  #allocation1 [shape = 'u32[144,128]{1,0:T(1,128)}', space=vmem, size = 0x12000, scoped, tag = 'internal scratch']
  #allocation2 [shape = 'f32[1,1]{1,0:T(1,128)S(6)}', space=smem, size = 0x200, scoped, tag = 'scoped memory for tpu_custom_call.1']
  #allocation3 [shape = 'f32[1,1]{1,0:T(1,128)S(6)}', space=smem, size = 0x200, scoped, tag = 'scoped memory for tpu_custom_call.1']
  %s0 = inlined_call_operand.<no memory space> [shape: f32[1,1], index: 0, kind: input, shape index: {}]
  %s1 = inlined_call_operand.<no memory space> [shape: f32[1,1], index: 1, kind: input, shape index: {}]
  %s2 = inlined_call_operand.hbm [shape: f32[4,1024], index: 2, kind: input, shape index: {}]
  %s3 = inlined_call_operand.hbm [shape: f32[4,1024], index: 3, kind: output, shape index: {}]
  %s4 = sld [smem:[#allocation0]]
  $region26: #{tpu_custom_call.1} parent=0
    _
  %s6 = ssub.s32 1, %s4
  %s7 = scalar_select 0, %s6, %s4
  %8 = sst [smem:[#allocation2]] %s0
  %9 = sst [smem:[#allocation3]] %s1
  $region1: #{tpu_custom_call.1} parent=0
    #allocation4 [shape = 'u8[16384]{0}', space=vmem, size = 0x4000, scoped, tag = 'input window, operand 2, single buffered']
    #allocation5 [shape = 's32[1]{0}', space=sflag, size = 0x4, scoped, tag = 'scoped memory for tpu_custom_call.1']
    #allocation6 [shape = 's32[1]{0}', space=sflag, size = 0x4, scoped, tag = 'scoped memory for tpu_custom_call.1']
    #allocation7 [shape = 'u8[16384]{0}', space=vmem, size = 0x4000, scoped, tag = 'output window, operand 0, single buffered']
    %10 = vsyncpa [#allocation5], 0
    %11 = vsyncpa [#allocation6], 0
    // Predicated region
    $region2: #{tpu_custom_call.1} parent=1 // pred_check
      _
    $region3: #{tpu_custom_call.1} parent=1 // pred_check_branch
      %13 = sbr.rel (0) target = $region5
    $region4: #{tpu_custom_call.1} parent=1 // pred_region
      _
    $region5: #{tpu_custom_call.1} parent=1 // pred_fallthru
      _
    // Predicated region
    $region6: #{tpu_custom_call.1} parent=1 // pred_check
      _
    $region7: #{tpu_custom_call.1} parent=1 // pred_check_branch
      %15 = sbr.rel (0) target = $region9
    $region8: #{tpu_custom_call.1} parent=1 // pred_region
      _
    $region9: #{tpu_custom_call.1} parent=1 // pred_fallthru
      _
    // Predicated region
    $region10: #{tpu_custom_call.1} parent=1 // pred_check
      _
    $region11: #{tpu_custom_call.1} parent=1 // pred_check_branch
      %17 = sbr.rel (0) target = $region13
    $region12: #{tpu_custom_call.1} parent=1 // pred_region
      %s19 = ssub.s32 512, 512
      %20 = vsyncadd [#allocation5], %s19
      %s22 = sshll.u32 [#allocation4], 4
      %s23 = int_to_ptr.vmem [resolvable:$true] %s22
      %25 = dma.hbm_to_vmem [thread:$0]  %s2, 512, %s23, [#allocation5]
    $region13: #{tpu_custom_call.1} parent=1 // pred_fallthru
      _
    // Predicated region
    $region14: #{tpu_custom_call.1} parent=1 // pred_check
      _
    $region15: #{tpu_custom_call.1} parent=1 // pred_check_branch
      %27 = sbr.rel (0) target = $region17
    $region16: #{tpu_custom_call.1} parent=1 // pred_region
      %28 = dma.done [#allocation5], 512
    $region17: #{tpu_custom_call.1} parent=1 // pred_fallthru
      _
    %s29 = sld [smem:[#allocation2]]
    %s30 = sld [smem:[#allocation3]]
    %v31 = vld [vmem:[#allocation4] sm:$0xff]
    %v32 = vld [vmem:[#allocation4 + $0x8] sm:$0xff]
    %v33 = vld [vmem:[#allocation4 + $0x10] sm:$0xff]
    %v34 = vld [vmem:[#allocation4 + $0x18] sm:$0xff]
    %v35 = vstv %s29
    %v36 = vmul.f32 %v31, %v35
    %v37 = vmul.f32 %v32, %v35
    %v38 = vmul.f32 %v33, %v35
    %v39 = vmul.f32 %v34, %v35
    %v40 = vstv %s30
    %v41 = vadd.f32 %v36, %v40
    %v42 = vadd.f32 %v37, %v40
    %v43 = vadd.f32 %v38, %v40
    %v44 = vadd.f32 %v39, %v40
    %45 = vst [vmem:[#allocation7] sm:$0xff] %v41
    %46 = vst [vmem:[#allocation7 + $0x8] sm:$0xff] %v42
    %47 = vst [vmem:[#allocation7 + $0x10] sm:$0xff] %v43
    %48 = vst [vmem:[#allocation7 + $0x18] sm:$0xff] %v44
    // Predicated region
    $region18: #{tpu_custom_call.1} parent=1 // pred_check
      _
    $region19: #{tpu_custom_call.1} parent=1 // pred_check_branch
      %50 = sbr.rel (0) target = $region21
    $region20: #{tpu_custom_call.1} parent=1 // pred_region
      %s52 = ssub.s32 512, 512
      %53 = vsyncadd [#allocation6], %s52
      %s55 = sshll.u32 [#allocation7], 4
      %s56 = int_to_ptr.vmem [resolvable:$true] %s55
      %58 = dma.vmem_to_hbm [thread:$0]  %s56, 512, %s3, [#allocation6]
    $region21: #{tpu_custom_call.1} parent=1 // pred_fallthru
      _
    // Predicated region
    $region22: #{tpu_custom_call.1} parent=1 // pred_check
      _
    $region23: #{tpu_custom_call.1} parent=1 // pred_check_branch
      %60 = sbr.rel (0) target = $region25
    $region24: #{tpu_custom_call.1} parent=1 // pred_region
      %61 = dma.done [#allocation6], 512
    $region25: #{tpu_custom_call.1} parent=1 // pred_fallthru
      _
    %62 = vsyncpa [#allocation5], 1
    %63 = vsyncpa [#allocation6], 1

</llo_original>
